<compile_context>
chip_gen: v5e
topology: v5e:2x2
jax: 0.10.0
libtpu: 0.0.40
codegen_flags: <defaults>
</compile_context>

<pallas_src>
import jax
import jax.numpy as jnp
from jax import lax
from jax.experimental import pallas as pl
from jax.experimental.pallas import tpu as pltpu

# Problem sizes (small, consistent with the module).
B = 2            # batch
T = 8            # decoder (target) length
S = 16           # encoder (source) length
E = 32           # embed_dim (d_model)
H = 4            # decoder_attention_heads
HD = E // H      # head_dim
F = 64           # decoder_ffn_dim
SCALING = HD ** -0.5
LN_EPS = 1e-5
NEG_INF = -1e9


def _gelu(x):
    # tanh-approximate GELU (differs from HF erf-GELU by < 1e-3; reference matches).
    c = 0.7978845608028654  # sqrt(2/pi)
    return 0.5 * x * (1.0 + jnp.tanh(c * (x + 0.044715 * x * x * x)))


def _layer_norm(x, g, b):
    mu = jnp.mean(x, axis=-1, keepdims=True)
    xc = x - mu
    var = jnp.mean(xc * xc, axis=-1, keepdims=True)
    return xc * lax.rsqrt(var + LN_EPS) * g + b


def _make_layer_kernel(BB):
    """One grid step handles BB batches; all heads in single block-diagonal matmuls."""
    R = BB * T          # query rows per step
    C = BB * H * S      # (batch-in-block, head, src) columns per step
    PAD = BB * S - R    # slab pad rows (>= 0 since S >= T)

    def kernel(hs_ref, enc_ref, add_ref, hmask_ref, seg_ref,
               wq_ref, bq_ref, wkv_ref, bkv_ref, wo_ref, bo_ref,
               ln1g_ref, ln1b_ref, wf1_ref, bf1_ref, wf2_ref, bf2_ref,
               ln2g_ref, ln2b_ref,
               slab_ref, attw_ref):
        f32, bf16 = jnp.float32, jnp.bfloat16
        hs2 = hs_ref[...].reshape(R, E)                   # (BB*T, E)   f32
        enc2 = enc_ref[...].reshape(BB * S, E)            # (BB*S, E)   f32

        # ---- projections: Q (decoder stream) + fused K|V (encoder stream) ----
        # bf16 MXU operands, f32 accumulation; residuals keep the f32 copies.
        q2 = (jnp.dot(hs2.astype(bf16), wq_ref[...],
                      preferred_element_type=f32) + bq_ref[...]) * SCALING   # (R, E)
        kv2 = (jnp.dot(enc2.astype(bf16), wkv_ref[...],
                       preferred_element_type=f32) + bkv_ref[...])           # (BB*S, 2E)

        # ---- block-diagonal (batch, head) expansion of K and V ----
        # one vmul with the host-precomputed 0/1 head-selection mask.
        kv_rep = jnp.broadcast_to(kv2.reshape(BB, 1, S, 2 * E),
                                  (BB, H, S, 2 * E)).reshape(C, 2 * E)
        kv_exp = (kv_rep * hmask_ref[...]).astype(bf16)   # (C, 2E) bf16
        k_exp = kv_exp[:, :E]                             # (C, E)
        v_exp = kv_exp[:, E:]                             # (C, E)

        # ---- all heads (and all batches of this block) in ONE MXU matmul ----
        scores = lax.dot_general(q2.astype(bf16), k_exp, (((1,), (1,)), ((), ())),
                                 preferred_element_type=f32)                 # (R, C)
        # pre-combined beta*bias + beta_bias + mask (+ cross-batch -1e9),
        # one row per batch, broadcast over the T sublanes here.
        scores = (scores.reshape(BB, T, C) + add_ref[0][:, None, :]).reshape(R, C)

        # ---- softmax, segmented per (batch, head) group of S columns ----
        # Per-row max is exact (shift-invariant per segment); per-segment sums
        # come from one matmul with the hoisted block-diagonal seg matrix.
        m = jnp.max(scores, axis=-1, keepdims=True)
        e = jnp.exp(scores - m)                                              # f32
        denom = jnp.dot(e.astype(bf16), seg_ref[...],
                        preferred_element_type=f32)                          # (R, C)
        denom = jnp.maximum(denom, 1e-20)   # fully-masked segments: e==0 -> p==0, no NaN
        p = e * pl.reciprocal(denom, approx=True)
        attw_ref[0] = p                     # lane-dense (C = BB*H*S = 128) attn probs

        # ---- attention output + out_proj ----
        ctx = jnp.dot(p.astype(bf16), v_exp, preferred_element_type=f32)     # (R, E)
        attn = (jnp.dot(ctx.astype(bf16), wo_ref[...],
                        preferred_element_type=f32) + bo_ref[...])

        # ---- residual + LayerNorm + FFN + residual + LayerNorm (dropout = 0) ----
        h1 = _layer_norm(hs2 + attn, ln1g_ref[...], ln1b_ref[...])
        ff = _gelu(jnp.dot(h1.astype(bf16), wf1_ref[...],
                           preferred_element_type=f32) + bf1_ref[...])
        h2 = (jnp.dot(ff.astype(bf16), wf2_ref[...],
                      preferred_element_type=f32) + bf2_ref[...])
        out2 = _layer_norm(h1 + h2, ln2g_ref[...], ln2b_ref[...])            # (R, E)

        # ---- lane-dense packed writeback: [ K|V (2E) | out (E) | attn (E) ] ----
        right = jnp.concatenate([out2, attn], axis=-1)                       # (R, 2E)
        if PAD > 0:
            right = jnp.concatenate(
                [right, jnp.zeros((PAD, 2 * E), f32)], axis=0)               # (BB*S, 2E)
        slab_ref[0] = jnp.concatenate([kv2, right], axis=-1)                 # (BB*S, 4E)

    return kernel


def copy_decoder_layer(hidden_states, encoder_hidden_states, params,
                       attention_bias, encoder_attention_mask, *, batch_block=None):
    """CopyDecoderLayer.forward (eval, skip_residual=False, output_attentions=True)."""
    BB = B if batch_block is None else batch_block
    assert B % BB == 0
    assert S >= T                      # needed by the packed-slab row layout
    nblk = B // BB
    R, C = BB * T, BB * H * S
    f32, bf16 = jnp.float32, jnp.bfloat16

    # Host-side weight layout prep: transpose to x @ W^T form, fuse K|V, bf16 weights.
    row = lambda x: x.reshape(1, -1).astype(f32)
    wq_t = params["q_w"].T.astype(bf16)
    wkv_t = jnp.concatenate([params["k_w"].T, params["v_w"].T], axis=1).astype(bf16)
    bkv = jnp.concatenate([params["k_b"], params["v_b"]]).reshape(1, 2 * E).astype(f32)
    wo_t = params["o_w"].T.astype(bf16)
    wf1_t = params["fc1_w"].T.astype(bf16)
    wf2_t = params["fc2_w"].T.astype(bf16)

    # Pre-combined additive score term, ONE row per (block, batch):
    #   add[blk, b, (g, h, s)] = beta*attention_bias[(blk*BB+g)*H + h, s] + beta_bias
    #                            + encoder_attention_mask[blk*BB+b, 0, 0, s]
    #                            + (-1e9 if g != b)
    # The encoder padding mask is t-invariant (standard _expand_mask usage), so one
    # row per batch suffices; the -1e9 cross-batch term makes exp() underflow to
    # exactly 0 there, so no in-kernel cross-batch zeroing is needed.
    # TODO(synk): a t-varying attention mask would need the full (nblk, R, C) layout.
    colterm = (params["beta"] * attention_bias
               + params["beta_bias"]).reshape(nblk, 1, BB, H, S)
    maskterm = encoder_attention_mask[:, 0, 0, :].reshape(nblk, BB, 1, 1, S)
    eye = jnp.eye(BB, dtype=f32).reshape(1, BB, BB, 1, 1)
    add_rows = (colterm + maskterm + (1.0 - eye) * NEG_INF).reshape(nblk, BB, C)
    add_rows = add_rows.astype(f32)

    # Hoisted constant masks (were built with iota/where inside the kernel before):
    #   head_mask[(g,h,s), j] = 1 iff head h owns feature j  (block-diag K/V expand)
    #   seg_ones[c, c']       = 1 iff same (batch, head) segment  (softmax denom)
    col_head = (jnp.arange(C) // S) % H
    feat_head = (jnp.arange(2 * E) % E) // HD
    head_mask = (col_head[:, None] == feat_head[None, :]).astype(f32)       # (C, 2E)
    seg = jnp.arange(C) // S
    seg_ones = (seg[:, None] == seg[None, :]).astype(bf16)                  # (C, C)

    def batched(shp):
        zeros = (0,) * (len(shp) - 1)
        return pl.BlockSpec(shp, lambda i: (i,) + zeros)

    def full(shp):
        zeros = (0,) * len(shp)
        return pl.BlockSpec(shp, lambda i: zeros)

    grid_spec = pltpu.PrefetchScalarGridSpec(
        num_scalar_prefetch=0,
        grid=(nblk,),
        in_specs=[
            batched((BB, T, E)),                 # hidden_states
            batched((BB, S, E)),                 # encoder_hidden_states
            batched((1, BB, C)),                 # pre-combined additive score rows
            full((C, 2 * E)),                    # head-selection mask (const)
            full((C, C)),                        # block-diag seg matrix (const, bf16)
            full((E, E)), full((1, E)),          # q_proj (bf16 w, f32 b)
            full((E, 2 * E)), full((1, 2 * E)),  # fused k|v proj
            full((E, E)), full((1, E)),          # out_proj
            full((1, E)), full((1, E)),          # encoder_attn_layer_norm g/b
            full((E, F)), full((1, F)),          # fc1
            full((F, E)), full((1, E)),          # fc2
            full((1, E)), full((1, E)),          # final_layer_norm g/b
        ],
        out_specs=[
            batched((1, BB * S, 4 * E)),         # packed 128-lane slab [K|V|out|attn]
            batched((1, R, C)),                  # attention probabilities (128 lanes)
        ],
    )
    out_shapes = (
        jax.ShapeDtypeStruct((nblk, BB * S, 4 * E), f32),
        jax.ShapeDtypeStruct((nblk, R, C), f32),
    )

    slab, attw_raw = pl.pallas_call(
        _make_layer_kernel(BB),
        out_shape=out_shapes,
        grid_spec=grid_spec,
        compiler_params=pltpu.CompilerParams(
            dimension_semantics=("parallel",)),
    )(hidden_states, encoder_hidden_states, add_rows, head_mask, seg_ones,
      wq_t, row(params["q_b"]), wkv_t, bkv, wo_t, row(params["o_b"]),
      row(params["ln1_g"]), row(params["ln1_b"]),
      wf1_t, row(params["fc1_b"]), wf2_t, row(params["fc2_b"]),
      row(params["ln2_g"]), row(params["ln2_b"]))

    # Host-side split of the packed slab + layout plumbing (slice/reshape/transpose only).
    kv = slab[:, :, :2 * E].reshape(B, S, 2 * E)
    out = slab[:, :R, 2 * E:3 * E].reshape(B, T, E)
    attn_pre = slab[:, :R, 3 * E:].reshape(B, T, E)
    p6 = attw_raw.reshape(nblk, BB, T, BB, H, S)
    cross_attn_weights = p6.sum(axis=3).reshape(B, T, H, S).transpose(0, 2, 1, 3)
    k_states = kv[:, :, :E].reshape(B, S, H, HD).transpose(0, 2, 1, 3)
    v_states = kv[:, :, E:].reshape(B, S, H, HD).transpose(0, 2, 1, 3)
    # Mirrors (hidden_states, self_attn_weights, cross_attn_weights, present_key_value).
    return out, attn_pre, cross_attn_weights, (k_states, v_states)


def reference(hidden_states, encoder_hidden_states, params,
              attention_bias, encoder_attention_mask):
    """Pure-JAX f32 replica of CopyDecoderLayer.forward (eval, output_attentions=True)."""
    hs, enc = hidden_states, encoder_hidden_states
    q = (hs @ params["q_w"].T + params["q_b"]) * SCALING
    k = enc @ params["k_w"].T + params["k_b"]
    v = enc @ params["v_w"].T + params["v_b"]
    shape_heads = lambda x, L: x.reshape(B, L, H, HD).transpose(0, 2, 1, 3)
    key_states = shape_heads(k, S)
    value_states = shape_heads(v, S)
    q_h = shape_heads(q, T).reshape(B * H, T, HD)
    k_h = key_states.reshape(B * H, S, HD)
    v_h = value_states.reshape(B * H, S, HD)
    aw = jnp.einsum("bqd,bkd->bqk", q_h, k_h)
    aw = aw + params["beta"] * attention_bias.reshape(B * H, 1, S) + params["beta_bias"]
    aw = (aw.reshape(B, H, T, S) + encoder_attention_mask).reshape(B * H, T, S)
    aw = jax.nn.softmax(aw, axis=-1)
    cross_attn_weights = aw.reshape(B, H, T, S)
    ao = jnp.einsum("bqk,bkd->bqd", aw, v_h)
    ao = ao.reshape(B, H, T, HD).transpose(0, 2, 1, 3).reshape(B, T, E)
    ao = ao @ params["o_w"].T + params["o_b"]
    self_attn_weights = ao
    h = _layer_norm(hs + ao, params["ln1_g"], params["ln1_b"])
    ff = _gelu(h @ params["fc1_w"].T + params["fc1_b"])
    h2 = ff @ params["fc2_w"].T + params["fc2_b"]
    h = _layer_norm(h + h2, params["ln2_g"], params["ln2_b"])
    return h, self_attn_weights, cross_attn_weights, (key_states, value_states)


if __name__ == "__main__":
    key = jax.random.PRNGKey(0)
    ks = iter(jax.random.split(key, 32))
    nrm = lambda shape, s=0.05: s * jax.random.normal(next(ks), shape, jnp.float32)

    params = {
        "q_w": nrm((E, E)), "q_b": nrm((E,)),
        "k_w": nrm((E, E)), "k_b": nrm((E,)),
        "v_w": nrm((E, E)), "v_b": nrm((E,)),
        "o_w": nrm((E, E)), "o_b": nrm((E,)),
        "beta": jnp.array([0.75], jnp.float32),
        "beta_bias": jnp.array([0.1], jnp.float32),
        "ln1_g": 1.0 + nrm((E,), 0.1), "ln1_b": nrm((E,), 0.1),
        "fc1_w": nrm((F, E)), "fc1_b": nrm((F,)),
        "fc2_w": nrm((E, F)), "fc2_b": nrm((E,)),
        "ln2_g": 1.0 + nrm((E,), 0.1), "ln2_b": nrm((E,), 0.1),
    }
    hidden_states = jax.random.normal(next(ks), (B, T, E), jnp.float32)
    encoder_hidden_states = jax.random.normal(next(ks), (B, S, E), jnp.float32)
    attention_bias = 0.1 * jax.random.normal(next(ks), (B * H, S), jnp.float32)
    # Encoder padding mask (0 = attend, -1e9 = masked), shape (B, 1, T, S).
    src_lens = jnp.array([S, 12])
    valid = jnp.arange(S)[None, :] < src_lens[:, None]
    encoder_attention_mask = jnp.broadcast_to(
        jnp.where(valid, 0.0, NEG_INF).astype(jnp.float32)[:, None, None, :],
        (B, 1, T, S))

    ref = reference(hidden_states, encoder_hidden_states, params,
                    attention_bias, encoder_attention_mask)

    outs = copy_decoder_layer(hidden_states, encoder_hidden_states, params,
                              attention_bias, encoder_attention_mask)
    outs = jax.block_until_ready(outs)
    out, attn_pre, attw, (k_st, v_st) = outs

    def check(name, got, want, atol, rtol):
        if not jnp.allclose(got, want, atol=atol, rtol=rtol):
            err = jnp.max(jnp.abs(got - want))
            raise AssertionError(f"{name} mismatch, max abs err = {err}")

    # Tolerances cover bf16 MXU operands (with f32 accumulation) and the approx
    # EUP softmax reciprocal; the reference is pure f32.
    check("hidden_states", out, ref[0], 2e-2, 2e-2)
    check("attn_output", attn_pre, ref[1], 1e-2, 1e-2)
    check("attn_weights", attw, ref[2], 5e-3, 5e-3)
    check("key_states", k_st, ref[3][0], 1e-2, 1e-2)
    check("value_states", v_st, ref[3][1], 1e-2, 1e-2)

    # TODO(synk): past_key_value-cache concatenation, the no-encoder branch and
    # training-mode dropout are host-side control flow and are not exercised here.
    print("KERNEL_OK")
</pallas_src>

<mosaic_0001>
module attributes {stable_mosaic.version = 11 : i64} {
  func.func @kernel(%arg0: i32, %arg1: memref<2x8x32xf32, #tpu.memory_space<vmem>>, %arg2: memref<2x16x32xf32, #tpu.memory_space<vmem>>, %arg3: memref<1x2x128xf32, #tpu.memory_space<vmem>>, %arg4: memref<128x64xf32, #tpu.memory_space<vmem>>, %arg5: memref<128x128xbf16, #tpu.memory_space<vmem>>, %arg6: memref<32x32xbf16, #tpu.memory_space<vmem>>, %arg7: memref<1x32xf32, #tpu.memory_space<vmem>>, %arg8: memref<32x64xbf16, #tpu.memory_space<vmem>>, %arg9: memref<1x64xf32, #tpu.memory_space<vmem>>, %arg10: memref<32x32xbf16, #tpu.memory_space<vmem>>, %arg11: memref<1x32xf32, #tpu.memory_space<vmem>>, %arg12: memref<1x32xf32, #tpu.memory_space<vmem>>, %arg13: memref<1x32xf32, #tpu.memory_space<vmem>>, %arg14: memref<32x64xbf16, #tpu.memory_space<vmem>>, %arg15: memref<1x64xf32, #tpu.memory_space<vmem>>, %arg16: memref<64x32xbf16, #tpu.memory_space<vmem>>, %arg17: memref<1x32xf32, #tpu.memory_space<vmem>>, %arg18: memref<1x32xf32, #tpu.memory_space<vmem>>, %arg19: memref<1x32xf32, #tpu.memory_space<vmem>>, %arg20: memref<1x32x128xf32, #tpu.memory_space<vmem>>, %arg21: memref<1x16x128xf32, #tpu.memory_space<vmem>>) attributes {dimension_semantics = [#tpu.dimension_semantics<parallel>], iteration_bounds = array<i64: 1>, scalar_prefetch = 0 : i64, scratch_operands = 0 : i64, tpu.core_type = #tpu.core_type<tc>, window_params = [{transform_indices = @transform_0, window_bounds = array<i64: 2, 8, 32>}, {transform_indices = @transform_1, window_bounds = array<i64: 2, 16, 32>}, {transform_indices = @transform_2, window_bounds = array<i64: 1, 2, 128>}, {pipeline_mode = #tpu.pipeline_mode<synchronous>, transform_indices = @transform_3, window_bounds = array<i64: 128, 64>}, {pipeline_mode = #tpu.pipeline_mode<synchronous>, transform_indices = @transform_4, window_bounds = array<i64: 128, 128>}, {pipeline_mode = #tpu.pipeline_mode<synchronous>, transform_indices = @transform_5, window_bounds = array<i64: 32, 32>}, {pipeline_mode = #tpu.pipeline_mode<synchronous>, transform_indices = @transform_6, window_bounds = array<i64: 1, 32>}, {pipeline_mode = #tpu.pipeline_mode<synchronous>, transform_indices = @transform_7, window_bounds = array<i64: 32, 64>}, {pipeline_mode = #tpu.pipeline_mode<synchronous>, transform_indices = @transform_8, window_bounds = array<i64: 1, 64>}, {pipeline_mode = #tpu.pipeline_mode<synchronous>, transform_indices = @transform_9, window_bounds = array<i64: 32, 32>}, {pipeline_mode = #tpu.pipeline_mode<synchronous>, transform_indices = @transform_10, window_bounds = array<i64: 1, 32>}, {pipeline_mode = #tpu.pipeline_mode<synchronous>, transform_indices = @transform_11, window_bounds = array<i64: 1, 32>}, {pipeline_mode = #tpu.pipeline_mode<synchronous>, transform_indices = @transform_12, window_bounds = array<i64: 1, 32>}, {pipeline_mode = #tpu.pipeline_mode<synchronous>, transform_indices = @transform_13, window_bounds = array<i64: 32, 64>}, {pipeline_mode = #tpu.pipeline_mode<synchronous>, transform_indices = @transform_14, window_bounds = array<i64: 1, 64>}, {pipeline_mode = #tpu.pipeline_mode<synchronous>, transform_indices = @transform_15, window_bounds = array<i64: 64, 32>}, {pipeline_mode = #tpu.pipeline_mode<synchronous>, transform_indices = @transform_16, window_bounds = array<i64: 1, 32>}, {pipeline_mode = #tpu.pipeline_mode<synchronous>, transform_indices = @transform_17, window_bounds = array<i64: 1, 32>}, {pipeline_mode = #tpu.pipeline_mode<synchronous>, transform_indices = @transform_18, window_bounds = array<i64: 1, 32>}, {transform_indices = @transform_19, window_bounds = array<i64: 1, 32, 128>}, {transform_indices = @transform_20, window_bounds = array<i64: 1, 16, 128>}]} {
    %c0 = arith.constant 0 : index
    %c0_0 = arith.constant 0 : index
    %c0_1 = arith.constant 0 : index
    %0 = vector.load %arg1[%c0, %c0_0, %c0_1] : memref<2x8x32xf32, #tpu.memory_space<vmem>>, vector<2x8x32xf32>
    %1 = vector.shape_cast %0 : vector<2x8x32xf32> to vector<16x32xf32>
    %c0_2 = arith.constant 0 : index
    %c0_3 = arith.constant 0 : index
    %c0_4 = arith.constant 0 : index
    %2 = vector.load %arg2[%c0_2, %c0_3, %c0_4] : memref<2x16x32xf32, #tpu.memory_space<vmem>>, vector<2x16x32xf32>
    %3 = vector.shape_cast %2 : vector<2x16x32xf32> to vector<32x32xf32>
    %4 = arith.truncf %1 : vector<16x32xf32> to vector<16x32xbf16>
    %c0_5 = arith.constant 0 : index
    %c0_6 = arith.constant 0 : index
    %5 = vector.load %arg6[%c0_5, %c0_6] : memref<32x32xbf16, #tpu.memory_space<vmem>>, vector<32x32xbf16>
    %cst = arith.constant dense<0.000000e+00> : vector<16x32xf32>
    %6 = tpu.matmul %4, %5, %cst {dimension_numbers = #tpu.dot_dimension_numbers<[1], [0], [0], [1], [0, 0, 1, 1], [], []>} : vector<16x32xbf16>, vector<32x32xbf16>, vector<16x32xf32> -> vector<16x32xf32>
    %c0_7 = arith.constant 0 : index
    %c0_8 = arith.constant 0 : index
    %7 = vector.load %arg7[%c0_7, %c0_8] : memref<1x32xf32, #tpu.memory_space<vmem>>, vector<1x32xf32>
    %8 = vector.broadcast %7 : vector<1x32xf32> to vector<16x32xf32>
    %9 = arith.addf %6, %8 : vector<16x32xf32>
    %cst_9 = arith.constant 0.353553385 : f32
    %10 = vector.broadcast %cst_9 : f32 to vector<16x32xf32>
    %11 = arith.mulf %9, %10 : vector<16x32xf32>
    %12 = arith.truncf %3 : vector<32x32xf32> to vector<32x32xbf16>
    %c0_10 = arith.constant 0 : index
    %c0_11 = arith.constant 0 : index
    %13 = vector.load %arg8[%c0_10, %c0_11] : memref<32x64xbf16, #tpu.memory_space<vmem>>, vector<32x64xbf16>
    %cst_12 = arith.constant dense<0.000000e+00> : vector<32x64xf32>
    %14 = tpu.matmul %12, %13, %cst_12 {dimension_numbers = #tpu.dot_dimension_numbers<[1], [0], [0], [1], [0, 0, 1, 1], [], []>} : vector<32x32xbf16>, vector<32x64xbf16>, vector<32x64xf32> -> vector<32x64xf32>
    %c0_13 = arith.constant 0 : index
    %c0_14 = arith.constant 0 : index
    %15 = vector.load %arg9[%c0_13, %c0_14] : memref<1x64xf32, #tpu.memory_space<vmem>>, vector<1x64xf32>
    %16 = vector.broadcast %15 : vector<1x64xf32> to vector<32x64xf32>
    %17 = arith.addf %14, %16 : vector<32x64xf32>
    %18 = vector.shape_cast %17 : vector<32x64xf32> to vector<2x1x16x64xf32>
    %19 = vector.shape_cast %18 : vector<2x1x16x64xf32> to vector<2x1x16x64xf32>
    %20 = vector.broadcast %19 : vector<2x1x16x64xf32> to vector<2x4x16x64xf32>
    %21 = vector.shape_cast %20 : vector<2x4x16x64xf32> to vector<128x64xf32>
    %c0_15 = arith.constant 0 : index
    %c0_16 = arith.constant 0 : index
    %22 = vector.load %arg4[%c0_15, %c0_16] : memref<128x64xf32, #tpu.memory_space<vmem>>, vector<128x64xf32>
    %23 = arith.mulf %21, %22 : vector<128x64xf32>
    %24 = arith.truncf %23 : vector<128x64xf32> to vector<128x64xbf16>
    %25 = vector.extract_strided_slice %24 {offsets = [0, 0], sizes = [128, 32], strides = [1, 1]} : vector<128x64xbf16> to vector<128x32xbf16>
    %26 = vector.extract_strided_slice %24 {offsets = [0, 32], sizes = [128, 32], strides = [1, 1]} : vector<128x64xbf16> to vector<128x32xbf16>
    %27 = arith.truncf %11 : vector<16x32xf32> to vector<16x32xbf16>
    %cst_17 = arith.constant dense<0.000000e+00> : vector<16x128xf32>
    %28 = tpu.matmul %27, %25, %cst_17 {dimension_numbers = #tpu.dot_dimension_numbers<[1], [1], [0], [0], [0, 0, 1, 0], [], []>} : vector<16x32xbf16>, vector<128x32xbf16>, vector<16x128xf32> -> vector<16x128xf32>
    %29 = vector.shape_cast %28 : vector<16x128xf32> to vector<2x8x128xf32>
    %c0_18 = arith.constant 0 : index
    %c0_19 = arith.constant 0 : index
    %c0_20 = arith.constant 0 : index
    %30 = vector.load %arg3[%c0_18, %c0_19, %c0_20] : memref<1x2x128xf32, #tpu.memory_space<vmem>>, vector<1x2x128xf32>
    %31 = vector.shape_cast %30 : vector<1x2x128xf32> to vector<2x128xf32>
    %32 = vector.shape_cast %31 : vector<2x128xf32> to vector<2x1x128xf32>
    %33 = vector.broadcast %32 : vector<2x1x128xf32> to vector<2x8x128xf32>
    %34 = arith.addf %29, %33 : vector<2x8x128xf32>
    %35 = vector.shape_cast %34 : vector<2x8x128xf32> to vector<16x128xf32>
    %cst_21 = arith.constant dense<0xFF800000> : vector<16xf32>
    %36 = vector.multi_reduction <maximumf>, %35, %cst_21 [1] : vector<16x128xf32> to vector<16xf32>
    %37 = vector.shape_cast %36 : vector<16xf32> to vector<16x1xf32>
    %38 = vector.broadcast %37 : vector<16x1xf32> to vector<16x128xf32>
    %39 = arith.subf %35, %38 : vector<16x128xf32>
    %40 = math.exp %39 : vector<16x128xf32>
    %41 = arith.truncf %40 : vector<16x128xf32> to vector<16x128xbf16>
    %c0_22 = arith.constant 0 : index
    %c0_23 = arith.constant 0 : index
    %42 = vector.load %arg5[%c0_22, %c0_23] : memref<128x128xbf16, #tpu.memory_space<vmem>>, vector<128x128xbf16>
    %cst_24 = arith.constant dense<0.000000e+00> : vector<16x128xf32>
    %43 = tpu.matmul %41, %42, %cst_24 {dimension_numbers = #tpu.dot_dimension_numbers<[1], [0], [0], [1], [0, 0, 1, 1], [], []>} : vector<16x128xbf16>, vector<128x128xbf16>, vector<16x128xf32> -> vector<16x128xf32>
    %cst_25 = arith.constant 9.99999968E-21 : f32
    %44 = vector.broadcast %cst_25 : f32 to vector<16x128xf32>
    %45 = arith.maximumf %43, %44 : vector<16x128xf32>
    %46 = tpu.reciprocal %45 {approx = true} : vector<16x128xf32> -> vector<16x128xf32>
    %47 = arith.mulf %40, %46 : vector<16x128xf32>
    %c0_26 = arith.constant 0 : index
    %c0_27 = arith.constant 0 : index
    %c0_28 = arith.constant 0 : index
    %48 = vector.load %arg21[%c0_26, %c0_27, %c0_28] : memref<1x16x128xf32, #tpu.memory_space<vmem>>, vector<1x16x128xf32>
    %49 = vector.shape_cast %48 : vector<1x16x128xf32> to vector<16x128xf32>
    %50 = vector.shape_cast %47 : vector<16x128xf32> to vector<1x16x128xf32>
    tpu.vector_store %arg21[%c0_26, %c0_27, %c0_28], %50 {strides = array<i32>} : memref<1x16x128xf32, #tpu.memory_space<vmem>>, vector<1x16x128xf32>,
    %51 = arith.truncf %47 : vector<16x128xf32> to vector<16x128xbf16>
    %cst_29 = arith.constant dense<0.000000e+00> : vector<16x32xf32>
    %52 = tpu.matmul %51, %26, %cst_29 {dimension_numbers = #tpu.dot_dimension_numbers<[1], [0], [0], [1], [0, 0, 1, 1], [], []>} : vector<16x128xbf16>, vector<128x32xbf16>, vector<16x32xf32> -> vector<16x32xf32>
    %53 = arith.truncf %52 : vector<16x32xf32> to vector<16x32xbf16>
    %c0_30 = arith.constant 0 : index
    %c0_31 = arith.constant 0 : index
    %54 = vector.load %arg10[%c0_30, %c0_31] : memref<32x32xbf16, #tpu.memory_space<vmem>>, vector<32x32xbf16>
    %cst_32 = arith.constant dense<0.000000e+00> : vector<16x32xf32>
    %55 = tpu.matmul %53, %54, %cst_32 {dimension_numbers = #tpu.dot_dimension_numbers<[1], [0], [0], [1], [0, 0, 1, 1], [], []>} : vector<16x32xbf16>, vector<32x32xbf16>, vector<16x32xf32> -> vector<16x32xf32>
    %c0_33 = arith.constant 0 : index
    %c0_34 = arith.constant 0 : index
    %56 = vector.load %arg11[%c0_33, %c0_34] : memref<1x32xf32, #tpu.memory_space<vmem>>, vector<1x32xf32>
    %57 = vector.broadcast %56 : vector<1x32xf32> to vector<16x32xf32>
    %58 = arith.addf %55, %57 : vector<16x32xf32>
    %59 = arith.addf %1, %58 : vector<16x32xf32>
    %c0_35 = arith.constant 0 : index
    %c0_36 = arith.constant 0 : index
    %60 = vector.load %arg12[%c0_35, %c0_36] : memref<1x32xf32, #tpu.memory_space<vmem>>, vector<1x32xf32>
    %c0_37 = arith.constant 0 : index
    %c0_38 = arith.constant 0 : index
    %61 = vector.load %arg13[%c0_37, %c0_38] : memref<1x32xf32, #tpu.memory_space<vmem>>, vector<1x32xf32>
    %cst_39 = arith.constant dense<0.000000e+00> : vector<16xf32>
    %62 = vector.multi_reduction <add>, %59, %cst_39 [1] : vector<16x32xf32> to vector<16xf32>
    %63 = vector.shape_cast %62 : vector<16xf32> to vector<16x1xf32>
    %cst_40 = arith.constant 3.200000e+01 : f32
    %64 = vector.broadcast %cst_40 : f32 to vector<16x1xf32>
    %65 = arith.divf %63, %64 : vector<16x1xf32>
    %66 = vector.broadcast %65 : vector<16x1xf32> to vector<16x32xf32>
    %67 = arith.subf %59, %66 : vector<16x32xf32>
    %68 = arith.mulf %67, %67 : vector<16x32xf32>
    %cst_41 = arith.constant dense<0.000000e+00> : vector<16xf32>
    %69 = vector.multi_reduction <add>, %68, %cst_41 [1] : vector<16x32xf32> to vector<16xf32>
    %70 = vector.shape_cast %69 : vector<16xf32> to vector<16x1xf32>
    %cst_42 = arith.constant 3.200000e+01 : f32
    %71 = vector.broadcast %cst_42 : f32 to vector<16x1xf32>
    %72 = arith.divf %70, %71 : vector<16x1xf32>
    %cst_43 = arith.constant 9.99999974E-6 : f32
    %73 = vector.broadcast %cst_43 : f32 to vector<16x1xf32>
    %74 = arith.addf %72, %73 : vector<16x1xf32>
    %75 = math.rsqrt %74 : vector<16x1xf32>
    %76 = vector.broadcast %75 : vector<16x1xf32> to vector<16x32xf32>
    %77 = arith.mulf %67, %76 : vector<16x32xf32>
    %78 = vector.broadcast %60 : vector<1x32xf32> to vector<16x32xf32>
    %79 = arith.mulf %77, %78 : vector<16x32xf32>
    %80 = vector.broadcast %61 : vector<1x32xf32> to vector<16x32xf32>
    %81 = arith.addf %79, %80 : vector<16x32xf32>
    %82 = arith.truncf %81 : vector<16x32xf32> to vector<16x32xbf16>
    %c0_44 = arith.constant 0 : index
    %c0_45 = arith.constant 0 : index
    %83 = vector.load %arg14[%c0_44, %c0_45] : memref<32x64xbf16, #tpu.memory_space<vmem>>, vector<32x64xbf16>
    %cst_46 = arith.constant dense<0.000000e+00> : vector<16x64xf32>
    %84 = tpu.matmul %82, %83, %cst_46 {dimension_numbers = #tpu.dot_dimension_numbers<[1], [0], [0], [1], [0, 0, 1, 1], [], []>} : vector<16x32xbf16>, vector<32x64xbf16>, vector<16x64xf32> -> vector<16x64xf32>
    %c0_47 = arith.constant 0 : index
    %c0_48 = arith.constant 0 : index
    %85 = vector.load %arg15[%c0_47, %c0_48] : memref<1x64xf32, #tpu.memory_space<vmem>>, vector<1x64xf32>
    %86 = vector.broadcast %85 : vector<1x64xf32> to vector<16x64xf32>
    %87 = arith.addf %84, %86 : vector<16x64xf32>
    %cst_49 = arith.constant 5.000000e-01 : f32
    %88 = vector.broadcast %cst_49 : f32 to vector<16x64xf32>
    %89 = arith.mulf %88, %87 : vector<16x64xf32>
    %cst_50 = arith.constant 4.471500e-02 : f32
    %90 = vector.broadcast %cst_50 : f32 to vector<16x64xf32>
    %91 = arith.mulf %90, %87 : vector<16x64xf32>
    %92 = arith.mulf %91, %87 : vector<16x64xf32>
    %93 = arith.mulf %92, %87 : vector<16x64xf32>
    %94 = arith.addf %87, %93 : vector<16x64xf32>
    %cst_51 = arith.constant 0.797884583 : f32
    %95 = vector.broadcast %cst_51 : f32 to vector<16x64xf32>
    %96 = arith.mulf %95, %94 : vector<16x64xf32>
    %97 = math.tanh %96 : vector<16x64xf32>
    %cst_52 = arith.constant 1.000000e+00 : f32
    %98 = vector.broadcast %cst_52 : f32 to vector<16x64xf32>
    %99 = arith.addf %98, %97 : vector<16x64xf32>
    %100 = arith.mulf %89, %99 : vector<16x64xf32>
    %101 = arith.truncf %100 : vector<16x64xf32> to vector<16x64xbf16>
    %c0_53 = arith.constant 0 : index
    %c0_54 = arith.constant 0 : index
    %102 = vector.load %arg16[%c0_53, %c0_54] : memref<64x32xbf16, #tpu.memory_space<vmem>>, vector<64x32xbf16>
    %cst_55 = arith.constant dense<0.000000e+00> : vector<16x32xf32>
    %103 = tpu.matmul %101, %102, %cst_55 {dimension_numbers = #tpu.dot_dimension_numbers<[1], [0], [0], [1], [0, 0, 1, 1], [], []>} : vector<16x64xbf16>, vector<64x32xbf16>, vector<16x32xf32> -> vector<16x32xf32>
    %c0_56 = arith.constant 0 : index
    %c0_57 = arith.constant 0 : index
    %104 = vector.load %arg17[%c0_56, %c0_57] : memref<1x32xf32, #tpu.memory_space<vmem>>, vector<1x32xf32>
    %105 = vector.broadcast %104 : vector<1x32xf32> to vector<16x32xf32>
    %106 = arith.addf %103, %105 : vector<16x32xf32>
    %107 = arith.addf %81, %106 : vector<16x32xf32>
    %c0_58 = arith.constant 0 : index
    %c0_59 = arith.constant 0 : index
    %108 = vector.load %arg18[%c0_58, %c0_59] : memref<1x32xf32, #tpu.memory_space<vmem>>, vector<1x32xf32>
    %c0_60 = arith.constant 0 : index
    %c0_61 = arith.constant 0 : index
    %109 = vector.load %arg19[%c0_60, %c0_61] : memref<1x32xf32, #tpu.memory_space<vmem>>, vector<1x32xf32>
    %cst_62 = arith.constant dense<0.000000e+00> : vector<16xf32>
    %110 = vector.multi_reduction <add>, %107, %cst_62 [1] : vector<16x32xf32> to vector<16xf32>
    %111 = vector.shape_cast %110 : vector<16xf32> to vector<16x1xf32>
    %cst_63 = arith.constant 3.200000e+01 : f32
    %112 = vector.broadcast %cst_63 : f32 to vector<16x1xf32>
    %113 = arith.divf %111, %112 : vector<16x1xf32>
    %114 = vector.broadcast %113 : vector<16x1xf32> to vector<16x32xf32>
    %115 = arith.subf %107, %114 : vector<16x32xf32>
    %116 = arith.mulf %115, %115 : vector<16x32xf32>
    %cst_64 = arith.constant dense<0.000000e+00> : vector<16xf32>
    %117 = vector.multi_reduction <add>, %116, %cst_64 [1] : vector<16x32xf32> to vector<16xf32>
    %118 = vector.shape_cast %117 : vector<16xf32> to vector<16x1xf32>
    %cst_65 = arith.constant 3.200000e+01 : f32
    %119 = vector.broadcast %cst_65 : f32 to vector<16x1xf32>
    %120 = arith.divf %118, %119 : vector<16x1xf32>
    %cst_66 = arith.constant 9.99999974E-6 : f32
    %121 = vector.broadcast %cst_66 : f32 to vector<16x1xf32>
    %122 = arith.addf %120, %121 : vector<16x1xf32>
    %123 = math.rsqrt %122 : vector<16x1xf32>
    %124 = vector.broadcast %123 : vector<16x1xf32> to vector<16x32xf32>
    %125 = arith.mulf %115, %124 : vector<16x32xf32>
    %126 = vector.broadcast %108 : vector<1x32xf32> to vector<16x32xf32>
    %127 = arith.mulf %125, %126 : vector<16x32xf32>
    %128 = vector.broadcast %109 : vector<1x32xf32> to vector<16x32xf32>
    %129 = arith.addf %127, %128 : vector<16x32xf32>
    %130 = tpu.concatenate %129, %58 in 1 : vector<16x32xf32>, vector<16x32xf32> -> vector<16x64xf32>
    %cst_67 = arith.constant 0.000000e+00 : f32
    %131 = vector.broadcast %cst_67 : f32 to vector<16x64xf32>
    %132 = tpu.concatenate %130, %131 in 0 : vector<16x64xf32>, vector<16x64xf32> -> vector<32x64xf32>
    %133 = tpu.concatenate %17, %132 in 1 : vector<32x64xf32>, vector<32x64xf32> -> vector<32x128xf32>
    %c0_68 = arith.constant 0 : index
    %c0_69 = arith.constant 0 : index
    %c0_70 = arith.constant 0 : index
    %134 = vector.load %arg20[%c0_68, %c0_69, %c0_70] : memref<1x32x128xf32, #tpu.memory_space<vmem>>, vector<1x32x128xf32>
    %135 = vector.shape_cast %134 : vector<1x32x128xf32> to vector<32x128xf32>
    %136 = vector.shape_cast %133 : vector<32x128xf32> to vector<1x32x128xf32>
    tpu.vector_store %arg20[%c0_68, %c0_69, %c0_70], %136 {strides = array<i32>} : memref<1x32x128xf32, #tpu.memory_space<vmem>>, vector<1x32x128xf32>,
    return
  }
  func.func @transform_0(%arg0: i32) -> (i32, i32, i32) {
    %c0_i32 = arith.constant 0 : i32
    %c0_i32_0 = arith.constant 0 : i32
    %c0_i32_1 = arith.constant 0 : i32
    return %arg0, %c0_i32, %c0_i32_0 : i32, i32, i32
  }
  func.func @transform_1(%arg0: i32) -> (i32, i32, i32) {
    %c0_i32 = arith.constant 0 : i32
    %c0_i32_0 = arith.constant 0 : i32
    %c0_i32_1 = arith.constant 0 : i32
    return %arg0, %c0_i32, %c0_i32_0 : i32, i32, i32
  }
  func.func @transform_2(%arg0: i32) -> (i32, i32, i32) {
    %c0_i32 = arith.constant 0 : i32
    %c0_i32_0 = arith.constant 0 : i32
    %c0_i32_1 = arith.constant 0 : i32
    return %arg0, %c0_i32, %c0_i32_0 : i32, i32, i32
  }
  func.func @transform_3(%arg0: i32) -> (i32, i32) {
    %c0_i32 = arith.constant 0 : i32
    %c0_i32_0 = arith.constant 0 : i32
    %c0_i32_1 = arith.constant 0 : i32
    return %c0_i32, %c0_i32_0 : i32, i32
  }
  func.func @transform_4(%arg0: i32) -> (i32, i32) {
    %c0_i32 = arith.constant 0 : i32
    %c0_i32_0 = arith.constant 0 : i32
    %c0_i32_1 = arith.constant 0 : i32
    return %c0_i32, %c0_i32_0 : i32, i32
  }
  func.func @transform_5(%arg0: i32) -> (i32, i32) {
    %c0_i32 = arith.constant 0 : i32
    %c0_i32_0 = arith.constant 0 : i32
    %c0_i32_1 = arith.constant 0 : i32
    return %c0_i32, %c0_i32_0 : i32, i32
  }
  func.func @transform_6(%arg0: i32) -> (i32, i32) {
    %c0_i32 = arith.constant 0 : i32
    %c0_i32_0 = arith.constant 0 : i32
    %c0_i32_1 = arith.constant 0 : i32
    return %c0_i32, %c0_i32_0 : i32, i32
  }
  func.func @transform_7(%arg0: i32) -> (i32, i32) {
    %c0_i32 = arith.constant 0 : i32
    %c0_i32_0 = arith.constant 0 : i32
    %c0_i32_1 = arith.constant 0 : i32
    return %c0_i32, %c0_i32_0 : i32, i32
  }
  func.func @transform_8(%arg0: i32) -> (i32, i32) {
    %c0_i32 = arith.constant 0 : i32
    %c0_i32_0 = arith.constant 0 : i32
    %c0_i32_1 = arith.constant 0 : i32
    return %c0_i32, %c0_i32_0 : i32, i32
  }
  func.func @transform_9(%arg0: i32) -> (i32, i32) {
    %c0_i32 = arith.constant 0 : i32
    %c0_i32_0 = arith.constant 0 : i32
    %c0_i32_1 = arith.constant 0 : i32
    return %c0_i32, %c0_i32_0 : i32, i32
  }
  func.func @transform_10(%arg0: i32) -> (i32, i32) {
    %c0_i32 = arith.constant 0 : i32
    %c0_i32_0 = arith.constant 0 : i32
    %c0_i32_1 = arith.constant 0 : i32
    return %c0_i32, %c0_i32_0 : i32, i32
  }
  func.func @transform_11(%arg0: i32) -> (i32, i32) {
    %c0_i32 = arith.constant 0 : i32
    %c0_i32_0 = arith.constant 0 : i32
    %c0_i32_1 = arith.constant 0 : i32
    return %c0_i32, %c0_i32_0 : i32, i32
  }
  func.func @transform_12(%arg0: i32) -> (i32, i32) {
    %c0_i32 = arith.constant 0 : i32
    %c0_i32_0 = arith.constant 0 : i32
    %c0_i32_1 = arith.constant 0 : i32
    return %c0_i32, %c0_i32_0 : i32, i32
  }
  func.func @transform_13(%arg0: i32) -> (i32, i32) {
    %c0_i32 = arith.constant 0 : i32
    %c0_i32_0 = arith.constant 0 : i32
    %c0_i32_1 = arith.constant 0 : i32
    return %c0_i32, %c0_i32_0 : i32, i32
  }
  func.func @transform_14(%arg0: i32) -> (i32, i32) {
    %c0_i32 = arith.constant 0 : i32
    %c0_i32_0 = arith.constant 0 : i32
    %c0_i32_1 = arith.constant 0 : i32
    return %c0_i32, %c0_i32_0 : i32, i32
  }
  func.func @transform_15(%arg0: i32) -> (i32, i32) {
    %c0_i32 = arith.constant 0 : i32
    %c0_i32_0 = arith.constant 0 : i32
    %c0_i32_1 = arith.constant 0 : i32
    return %c0_i32, %c0_i32_0 : i32, i32
  }
  func.func @transform_16(%arg0: i32) -> (i32, i32) {
    %c0_i32 = arith.constant 0 : i32
    %c0_i32_0 = arith.constant 0 : i32
    %c0_i32_1 = arith.constant 0 : i32
    return %c0_i32, %c0_i32_0 : i32, i32
  }
  func.func @transform_17(%arg0: i32) -> (i32, i32) {
    %c0_i32 = arith.constant 0 : i32
    %c0_i32_0 = arith.constant 0 : i32
    %c0_i32_1 = arith.constant 0 : i32
    return %c0_i32, %c0_i32_0 : i32, i32
  }
  func.func @transform_18(%arg0: i32) -> (i32, i32) {
    %c0_i32 = arith.constant 0 : i32
    %c0_i32_0 = arith.constant 0 : i32
    %c0_i32_1 = arith.constant 0 : i32
    return %c0_i32, %c0_i32_0 : i32, i32
  }
  func.func @transform_19(%arg0: i32) -> (i32, i32, i32) {
    %c0_i32 = arith.constant 0 : i32
    %c0_i32_0 = arith.constant 0 : i32
    %c0_i32_1 = arith.constant 0 : i32
    return %arg0, %c0_i32, %c0_i32_0 : i32, i32, i32
  }
  func.func @transform_20(%arg0: i32) -> (i32, i32, i32) {
    %c0_i32 = arith.constant 0 : i32
    %c0_i32_0 = arith.constant 0 : i32
    %c0_i32_1 = arith.constant 0 : i32
    return %arg0, %c0_i32, %c0_i32_0 : i32, i32, i32
  }
}

</mosaic_0001>

<llo_original>
// kernel: tpu_custom_call.1
$region0: #{tpu_custom_call.1}
  #allocation0 [shape = 'u32[]', space=smem, size = 0x4, offset = 0x4, fixed_abs, tag = 'smem constant byte address 0x4 - core index']
  #allocation1 [shape = 'u32[72,128]{1,0:T(1,128)}', space=vmem, size = 0x9000, scoped, tag = 'internal scratch']
  %s0 = inlined_call_operand.vmem [shape: f32[2,8,32], index: 0, kind: input, shape index: {}]
  %s1 = inlined_call_operand.vmem [shape: f32[2,16,32], index: 1, kind: input, shape index: {}]
  %s2 = inlined_call_operand.vmem [shape: f32[1,2,128], index: 2, kind: input, shape index: {}]
  %s3 = inlined_call_operand.vmem [shape: f32[128,64], index: 3, kind: input, shape index: {}]
  %s4 = inlined_call_operand.vmem [shape: bf16[128,128], index: 4, kind: input, shape index: {}]
  %s5 = inlined_call_operand.vmem [shape: bf16[32,32], index: 5, kind: input, shape index: {}]
  %s6 = inlined_call_operand.vmem [shape: f32[1,32], index: 6, kind: input, shape index: {}]
  %s7 = inlined_call_operand.vmem [shape: bf16[32,64], index: 7, kind: input, shape index: {}]
  %s8 = inlined_call_operand.vmem [shape: f32[1,64], index: 8, kind: input, shape index: {}]
  %s9 = inlined_call_operand.vmem [shape: bf16[32,32], index: 9, kind: input, shape index: {}]
  %s10 = inlined_call_operand.vmem [shape: f32[1,32], index: 10, kind: input, shape index: {}]
  %s11 = inlined_call_operand.vmem [shape: f32[1,32], index: 11, kind: input, shape index: {}]
  %s12 = inlined_call_operand.vmem [shape: f32[1,32], index: 12, kind: input, shape index: {}]
  %s13 = inlined_call_operand.vmem [shape: bf16[32,64], index: 13, kind: input, shape index: {}]
  %s14 = inlined_call_operand.vmem [shape: f32[1,64], index: 14, kind: input, shape index: {}]
  %s15 = inlined_call_operand.vmem [shape: bf16[64,32], index: 15, kind: input, shape index: {}]
  %s16 = inlined_call_operand.vmem [shape: f32[1,32], index: 16, kind: input, shape index: {}]
  %s17 = inlined_call_operand.vmem [shape: f32[1,32], index: 17, kind: input, shape index: {}]
  %s18 = inlined_call_operand.vmem [shape: f32[1,32], index: 18, kind: input, shape index: {}]
  %s19 = inlined_call_operand.hbm [shape: f32[1,32,128], index: 19, kind: output, shape index: {0}]
  %s20 = inlined_call_operand.hbm [shape: f32[1,16,128], index: 20, kind: output, shape index: {1}]
  %21 = xla_tuple %s19, %s20
  %s22 = sld [smem:[#allocation0]]
  $region94: #{tpu_custom_call.1} parent=0
    _
  %s24 = ssub.s32 1, %s22
  %s25 = scalar_select 0, %s24, %s22
  $region1: #{tpu_custom_call.1} parent=0
    #allocation2 [shape = 'u8[16384]{0}', space=vmem, size = 0x4000, scoped, tag = 'output window, operand 0, single buffered']
    #allocation3 [shape = 's32[1]{0}', space=sflag, size = 0x4, scoped, tag = 'scoped memory for tpu_custom_call.1']
    #allocation4 [shape = 'u8[8192]{0}', space=vmem, size = 0x2000, scoped, tag = 'output window, operand 1, single buffered']
    #allocation5 [shape = 's32[1]{0}', space=sflag, size = 0x4, scoped, tag = 'scoped memory for tpu_custom_call.1']
    %26 = vsyncpa [#allocation3], 0
    %27 = vsyncpa [#allocation5], 0
    // Predicated region
    $region2: #{tpu_custom_call.1} parent=1 // pred_check
      _
    $region3: #{tpu_custom_call.1} parent=1 // pred_check_branch
      %29 = sbr.rel (0) target = $region5
    $region4: #{tpu_custom_call.1} parent=1 // pred_region
      _
    $region5: #{tpu_custom_call.1} parent=1 // pred_fallthru
      _
    // Predicated region
    $region6: #{tpu_custom_call.1} parent=1 // pred_check
      _
    $region7: #{tpu_custom_call.1} parent=1 // pred_check_branch
      %31 = sbr.rel (0) target = $region9
    $region8: #{tpu_custom_call.1} parent=1 // pred_region
      _
    $region9: #{tpu_custom_call.1} parent=1 // pred_fallthru
      _
    // Predicated region
    $region10: #{tpu_custom_call.1} parent=1 // pred_check
      _
    $region11: #{tpu_custom_call.1} parent=1 // pred_check_branch
      %33 = sbr.rel (0) target = $region13
    $region12: #{tpu_custom_call.1} parent=1 // pred_region
      _
    $region13: #{tpu_custom_call.1} parent=1 // pred_fallthru
      _
    // Predicated region
    $region14: #{tpu_custom_call.1} parent=1 // pred_check
      _
    $region15: #{tpu_custom_call.1} parent=1 // pred_check_branch
      %35 = sbr.rel (0) target = $region17
    $region16: #{tpu_custom_call.1} parent=1 // pred_region
      _
    $region17: #{tpu_custom_call.1} parent=1 // pred_fallthru
      _
    // Predicated region
    $region18: #{tpu_custom_call.1} parent=1 // pred_check
      _
    $region19: #{tpu_custom_call.1} parent=1 // pred_check_branch
      %37 = sbr.rel (0) target = $region21
    $region20: #{tpu_custom_call.1} parent=1 // pred_region
      _
    $region21: #{tpu_custom_call.1} parent=1 // pred_fallthru
      _
    // Predicated region
    $region22: #{tpu_custom_call.1} parent=1 // pred_check
      _
    $region23: #{tpu_custom_call.1} parent=1 // pred_check_branch
      %39 = sbr.rel (0) target = $region25
    $region24: #{tpu_custom_call.1} parent=1 // pred_region
      _
    $region25: #{tpu_custom_call.1} parent=1 // pred_fallthru
      _
    // Predicated region
    $region26: #{tpu_custom_call.1} parent=1 // pred_check
      _
    $region27: #{tpu_custom_call.1} parent=1 // pred_check_branch
      %41 = sbr.rel (0) target = $region29
    $region28: #{tpu_custom_call.1} parent=1 // pred_region
      _
    $region29: #{tpu_custom_call.1} parent=1 // pred_fallthru
      _
    // Predicated region
    $region30: #{tpu_custom_call.1} parent=1 // pred_check
      _
    $region31: #{tpu_custom_call.1} parent=1 // pred_check_branch
      %43 = sbr.rel (0) target = $region33
    $region32: #{tpu_custom_call.1} parent=1 // pred_region
      _
    $region33: #{tpu_custom_call.1} parent=1 // pred_fallthru
      _
    // Predicated region
    $region34: #{tpu_custom_call.1} parent=1 // pred_check
      _
    $region35: #{tpu_custom_call.1} parent=1 // pred_check_branch
      %45 = sbr.rel (0) target = $region37
    $region36: #{tpu_custom_call.1} parent=1 // pred_region
      _
    $region37: #{tpu_custom_call.1} parent=1 // pred_fallthru
      _
    // Predicated region
    $region38: #{tpu_custom_call.1} parent=1 // pred_check
      _
    $region39: #{tpu_custom_call.1} parent=1 // pred_check_branch
      %47 = sbr.rel (0) target = $region41
    $region40: #{tpu_custom_call.1} parent=1 // pred_region
      _
    $region41: #{tpu_custom_call.1} parent=1 // pred_fallthru
      _
    // Predicated region
    $region42: #{tpu_custom_call.1} parent=1 // pred_check
      _
    $region43: #{tpu_custom_call.1} parent=1 // pred_check_branch
      %49 = sbr.rel (0) target = $region45
    $region44: #{tpu_custom_call.1} parent=1 // pred_region
      _
    $region45: #{tpu_custom_call.1} parent=1 // pred_fallthru
      _
    // Predicated region
    $region46: #{tpu_custom_call.1} parent=1 // pred_check
      _
    $region47: #{tpu_custom_call.1} parent=1 // pred_check_branch
      %51 = sbr.rel (0) target = $region49
    $region48: #{tpu_custom_call.1} parent=1 // pred_region
      _
    $region49: #{tpu_custom_call.1} parent=1 // pred_fallthru
      _
    // Predicated region
    $region50: #{tpu_custom_call.1} parent=1 // pred_check
      _
    $region51: #{tpu_custom_call.1} parent=1 // pred_check_branch
      %53 = sbr.rel (0) target = $region53
    $region52: #{tpu_custom_call.1} parent=1 // pred_region
      _
    $region53: #{tpu_custom_call.1} parent=1 // pred_fallthru
      _
    // Predicated region
    $region54: #{tpu_custom_call.1} parent=1 // pred_check
      _
    $region55: #{tpu_custom_call.1} parent=1 // pred_check_branch
      %55 = sbr.rel (0) target = $region57
    $region56: #{tpu_custom_call.1} parent=1 // pred_region
      _
    $region57: #{tpu_custom_call.1} parent=1 // pred_fallthru
      _
    // Predicated region
    $region58: #{tpu_custom_call.1} parent=1 // pred_check
      _
    $region59: #{tpu_custom_call.1} parent=1 // pred_check_branch
      %57 = sbr.rel (0) target = $region61
    $region60: #{tpu_custom_call.1} parent=1 // pred_region
      _
    $region61: #{tpu_custom_call.1} parent=1 // pred_fallthru
      _
    // Predicated region
    $region62: #{tpu_custom_call.1} parent=1 // pred_check
      _
    $region63: #{tpu_custom_call.1} parent=1 // pred_check_branch
      %59 = sbr.rel (0) target = $region65
    $region64: #{tpu_custom_call.1} parent=1 // pred_region
      _
    $region65: #{tpu_custom_call.1} parent=1 // pred_fallthru
      _
    // Predicated region
    $region66: #{tpu_custom_call.1} parent=1 // pred_check
      _
    $region67: #{tpu_custom_call.1} parent=1 // pred_check_branch
      %61 = sbr.rel (0) target = $region69
    $region68: #{tpu_custom_call.1} parent=1 // pred_region
      _
    $region69: #{tpu_custom_call.1} parent=1 // pred_fallthru
      _
    // Predicated region
    $region70: #{tpu_custom_call.1} parent=1 // pred_check
      _
    $region71: #{tpu_custom_call.1} parent=1 // pred_check_branch
      %63 = sbr.rel (0) target = $region73
    $region72: #{tpu_custom_call.1} parent=1 // pred_region
      _
    $region73: #{tpu_custom_call.1} parent=1 // pred_fallthru
      _
    // Predicated region
    $region74: #{tpu_custom_call.1} parent=1 // pred_check
      _
    $region75: #{tpu_custom_call.1} parent=1 // pred_check_branch
      %65 = sbr.rel (0) target = $region77
    $region76: #{tpu_custom_call.1} parent=1 // pred_region
      _
    $region77: #{tpu_custom_call.1} parent=1 // pred_fallthru
      _
    %v67 = vld [vmem:[%s0] sm:$0xff]
    %v68 = vld [vmem:[%s0 + $0x8] sm:$0xff]
    %v69 = vld [vmem:[%s1] sm:$0xff]
    %v70 = vld [vmem:[%s1 + $0x8] sm:$0xff]
    %v71 = vld [vmem:[%s1 + $0x10] sm:$0xff]
    %v72 = vld [vmem:[%s1 + $0x18] sm:$0xff]
    %v73 = vpack.c.bf16 %v68, %v67
    %v74 = vld [vmem:[%s5] sm:$0xf]
    %v75 = vld [vmem:[%s5 + $0x4] sm:$0xf]
    %v76 = vld [vmem:[%s5 + $0x8] sm:$0xf]
    %v77 = vld [vmem:[%s5 + $0xc] sm:$0xf]
    %v78 = vld [vmem:[%s6] sm:$0x1]
    %v80 = vperm.slane %v78, 0
    %v86 = vunpack.c.l.b16 %v74
    %v87 = vunpack.c.l.b16 %v75
    %v88 = vunpack.c.l.b16 %v76
    %v89 = vunpack.c.l.b16 %v77
    %v90 = vpack.c.b16 %v87, %v86
    %v91 = vpack.c.b16 %v89, %v88
    %vm94 = vcmask 261120
    %v96 = vsel %vm94, %v73, 0
    %98 = vmatpush.bf16.msra.mxu0 0
    %99 = vmatpush.bf16.msra.mxu0 0
    %100 = vmatpush.bf16.msra.mxu0 0
    %101 = vmatpush.bf16.msra.mxu0 0
    %102 = vmatpush.bf16.msra.mxu0 0
    %103 = vmatpush.bf16.msra.mxu0 0
    %104 = vmatpush.bf16.msra.mxu0 %v91
    %105 = vmatpush.bf16.msra.mxu0 %v90
    %106 = vmatmul.bf16.gmra.mxu0 %v96
    %v107 = vpop.f32.mrf.mxu0
    %v108 = vadd.f32 %v80, %v107
    %v109 = vpop.f32.mrf.mxu0
    %v110 = vadd.f32 %v80, %v109
    %111 = vdwg.mxu0
    %v112 = vmul.f32 %v108, 0.35355338
    %v113 = vmul.f32 %v110, 0.35355338
    %v114 = vpack.c.bf16 %v70, %v69
    %v115 = vpack.c.bf16 %v72, %v71
    %v116 = vld [vmem:[%s7] sm:$0xf]
    %v117 = vld [vmem:[%s7 + $0x4] sm:$0xf]
    %v118 = vld [vmem:[%s7 + $0x8] sm:$0xf]
    %v119 = vld [vmem:[%s7 + $0xc] sm:$0xf]
    %v120 = vld [vmem:[%s8] sm:$0x1]
    %v122 = vperm.slane %v120, 0
    %v128 = vunpack.c.l.b16 %v116
    %v129 = vunpack.c.l.b16 %v117
    %v130 = vunpack.c.l.b16 %v118
    %v131 = vunpack.c.l.b16 %v119
    %v132 = vpack.c.b16 %v129, %v128
    %v133 = vpack.c.b16 %v131, %v130
    %v137 = vsel %vm94, %v114, 0
    %v140 = vsel %vm94, %v115, 0
    %142 = vmatpush.bf16.msra.mxu0 0
    %143 = vmatpush.bf16.msra.mxu0 0
    %144 = vmatpush.bf16.msra.mxu0 0
    %145 = vmatpush.bf16.msra.mxu0 0
    %146 = vmatpush.bf16.msra.mxu0 0
    %147 = vmatpush.bf16.msra.mxu0 0
    %148 = vmatpush.bf16.msra.mxu0 %v133
    %149 = vmatpush.bf16.msra.mxu0 %v132
    %150 = vmatmul.bf16.gmra.mxu0 %v137
    %v151 = vpop.f32.mrf.mxu0
    %v152 = vadd.f32 %v122, %v151
    %v153 = vpop.f32.mrf.mxu0
    %v154 = vadd.f32 %v122, %v153
    %155 = vmatmul.bf16.gmra.mxu0 %v140
    %v156 = vpop.f32.mrf.mxu0
    %v157 = vadd.f32 %v122, %v156
    %v158 = vpop.f32.mrf.mxu0
    %v159 = vadd.f32 %v122, %v158
    %160 = vdwg.mxu0
    %v161 = vld [vmem:[%s3] sm:$0xff]
    %v162 = vld [vmem:[%s3 + $0x8] sm:$0xff]
    %v163 = vld [vmem:[%s3 + $0x10] sm:$0xff]
    %v164 = vld [vmem:[%s3 + $0x18] sm:$0xff]
    %v165 = vld [vmem:[%s3 + $0x20] sm:$0xff]
    %v166 = vld [vmem:[%s3 + $0x28] sm:$0xff]
    %v167 = vld [vmem:[%s3 + $0x30] sm:$0xff]
    %v168 = vld [vmem:[%s3 + $0x38] sm:$0xff]
    %v169 = vld [vmem:[%s3 + $0x40] sm:$0xff]
    %v170 = vld [vmem:[%s3 + $0x48] sm:$0xff]
    %v171 = vld [vmem:[%s3 + $0x50] sm:$0xff]
    %v172 = vld [vmem:[%s3 + $0x58] sm:$0xff]
    %v173 = vld [vmem:[%s3 + $0x60] sm:$0xff]
    %v174 = vld [vmem:[%s3 + $0x68] sm:$0xff]
    %v175 = vld [vmem:[%s3 + $0x70] sm:$0xff]
    %v176 = vld [vmem:[%s3 + $0x78] sm:$0xff]
    %v177 = vmul.f32 %v152, %v161
    %v178 = vmul.f32 %v154, %v162
    %v179 = vmul.f32 %v152, %v163
    %v180 = vmul.f32 %v154, %v164
    %v181 = vmul.f32 %v152, %v165
    %v182 = vmul.f32 %v154, %v166
    %v183 = vmul.f32 %v152, %v167
    %v184 = vmul.f32 %v154, %v168
    %v185 = vmul.f32 %v157, %v169
    %v186 = vmul.f32 %v159, %v170
    %v187 = vmul.f32 %v157, %v171
    %v188 = vmul.f32 %v159, %v172
    %v189 = vmul.f32 %v157, %v173
    %v190 = vmul.f32 %v159, %v174
    %v191 = vmul.f32 %v157, %v175
    %v192 = vmul.f32 %v159, %v176
    %v193 = vpack.c.bf16 %v177, %v177
    %v194 = vpack.c.bf16 %v178, %v178
    %v195 = vpack.c.bf16 %v179, %v179
    %v196 = vpack.c.bf16 %v180, %v180
    %v197 = vpack.c.bf16 %v181, %v181
    %v198 = vpack.c.bf16 %v182, %v182
    %v199 = vpack.c.bf16 %v183, %v183
    %v200 = vpack.c.bf16 %v184, %v184
    %v201 = vpack.c.bf16 %v185, %v185
    %v202 = vpack.c.bf16 %v186, %v186
    %v203 = vpack.c.bf16 %v187, %v187
    %v204 = vpack.c.bf16 %v188, %v188
    %v205 = vpack.c.bf16 %v189, %v189
    %v206 = vpack.c.bf16 %v190, %v190
    %v207 = vpack.c.bf16 %v191, %v191
    %v208 = vpack.c.bf16 %v192, %v192
    %v209 = vpack.c.bf16 %v113, %v112
    %v226 = vunpack.c.l.b16 %v193
    %v227 = vunpack.c.l.b16 %v194
    %v228 = vunpack.c.l.b16 %v195
    %v229 = vunpack.c.l.b16 %v196
    %v230 = vunpack.c.l.b16 %v197
    %v231 = vunpack.c.l.b16 %v198
    %v232 = vunpack.c.l.b16 %v199
    %v233 = vunpack.c.l.b16 %v200
    %v234 = vunpack.c.l.b16 %v201
    %v235 = vunpack.c.l.b16 %v202
    %v236 = vunpack.c.l.b16 %v203
    %v237 = vunpack.c.l.b16 %v204
    %v238 = vunpack.c.l.b16 %v205
    %v239 = vunpack.c.l.b16 %v206
    %v240 = vunpack.c.l.b16 %v207
    %v241 = vunpack.c.l.b16 %v208
    %v242 = vpack.c.b16 %v227, %v226
    %v243 = vpack.c.b16 %v229, %v228
    %v244 = vpack.c.b16 %v231, %v230
    %v245 = vpack.c.b16 %v233, %v232
    %v246 = vpack.c.b16 %v235, %v234
    %v247 = vpack.c.b16 %v237, %v236
    %v248 = vpack.c.b16 %v239, %v238
    %v249 = vpack.c.b16 %v241, %v240
    %v251 = vsel %vm94, %v209, 0
    %v254 = vsel %vm94, %v242, 0
    %v257 = vsel %vm94, %v243, 0
    %v260 = vsel %vm94, %v244, 0
    %v263 = vsel %vm94, %v245, 0
    %v266 = vsel %vm94, %v246, 0
    %v269 = vsel %vm94, %v247, 0
    %v272 = vsel %vm94, %v248, 0
    %v275 = vsel %vm94, %v249, 0
    %277 = vmatpush.bf16.xpose.msra.mxu0 %v275
    %278 = vmatpush.bf16.xpose.msra.mxu0 %v272
    %279 = vmatpush.bf16.xpose.msra.mxu0 %v269
    %280 = vmatpush.bf16.xpose.msra.mxu0 %v266
    %281 = vmatpush.bf16.xpose.msra.mxu0 %v263
    %282 = vmatpush.bf16.xpose.msra.mxu0 %v260
    %283 = vmatpush.bf16.xpose.msra.mxu0 %v257
    %284 = vmatpush.bf16.xpose.msra.mxu0 %v254
    %285 = vmatmul.bf16.gmra.mxu0 %v251
    %v286 = vpop.f32.mrf.mxu0
    %v287 = vadd.f32 0.0, %v286
    %v288 = vpop.f32.mrf.mxu0
    %v289 = vadd.f32 0.0, %v288
    %290 = vdwg.mxu0
    %v291 = vld [vmem:[%s2] sm:$0x3]
    %v293 = vrot.slane %v291, 1
    %v294 = vperm.slane %v291, 0
    %v295 = vperm.slane %v293, 0
    %v298 = vadd.f32 %v287, %v294
    %v299 = vadd.f32 %v289, %v295
    %300 = vmax.xlane.f32.xlu0 %v298
    %v301 = vpop.xlane.xlu0 %300
    %302 = vmax.xlane.f32.xlu0 %v299
    %v303 = vpop.xlane.xlu0 %302
    %v304 = vsub.f32 %v298, %v301
    %v305 = vsub.f32 %v299, %v303
    %v306 = vmul.f32 %v304, 1.442695
    %v307 = vpow.pop %v306
    %v308 = vmul.f32 %v305, 1.442695
    %v309 = vpow.pop %v308
    %v310 = vpack.c.bf16 %v309, %v307
    %v311 = vld [vmem:[%s4] sm:$0xf]
    %v312 = vld [vmem:[%s4 + $0x4] sm:$0xf]
    %v313 = vld [vmem:[%s4 + $0x8] sm:$0xf]
    %v314 = vld [vmem:[%s4 + $0xc] sm:$0xf]
    %v315 = vld [vmem:[%s4 + $0x10] sm:$0xf]
    %v316 = vld [vmem:[%s4 + $0x14] sm:$0xf]
    %v317 = vld [vmem:[%s4 + $0x18] sm:$0xf]
    %v318 = vld [vmem:[%s4 + $0x1c] sm:$0xf]
    %v319 = vld [vmem:[%s4 + $0x20] sm:$0xf]
    %v320 = vld [vmem:[%s4 + $0x24] sm:$0xf]
    %v321 = vld [vmem:[%s4 + $0x28] sm:$0xf]
    %v322 = vld [vmem:[%s4 + $0x2c] sm:$0xf]
    %v323 = vld [vmem:[%s4 + $0x30] sm:$0xf]
    %v324 = vld [vmem:[%s4 + $0x34] sm:$0xf]
    %v325 = vld [vmem:[%s4 + $0x38] sm:$0xf]
    %v326 = vld [vmem:[%s4 + $0x3c] sm:$0xf]
    %v343 = vunpack.c.l.b16 %v311
    %v344 = vunpack.c.l.b16 %v312
    %v345 = vunpack.c.l.b16 %v313
    %v346 = vunpack.c.l.b16 %v314
    %v347 = vunpack.c.l.b16 %v315
    %v348 = vunpack.c.l.b16 %v316
    %v349 = vunpack.c.l.b16 %v317
    %v350 = vunpack.c.l.b16 %v318
    %v351 = vunpack.c.l.b16 %v319
    %v352 = vunpack.c.l.b16 %v320
    %v353 = vunpack.c.l.b16 %v321
    %v354 = vunpack.c.l.b16 %v322
    %v355 = vunpack.c.l.b16 %v323
    %v356 = vunpack.c.l.b16 %v324
    %v357 = vunpack.c.l.b16 %v325
    %v358 = vunpack.c.l.b16 %v326
    %v359 = vpack.c.b16 %v344, %v343
    %v360 = vpack.c.b16 %v346, %v345
    %v361 = vpack.c.b16 %v348, %v347
    %v362 = vpack.c.b16 %v350, %v349
    %v363 = vpack.c.b16 %v352, %v351
    %v364 = vpack.c.b16 %v354, %v353
    %v365 = vpack.c.b16 %v356, %v355
    %v366 = vpack.c.b16 %v358, %v357
    %375 = vmatpush.bf16.msra.mxu0 %v366
    %376 = vmatpush.bf16.msra.mxu0 %v365
    %377 = vmatpush.bf16.msra.mxu0 %v364
    %378 = vmatpush.bf16.msra.mxu0 %v363
    %379 = vmatpush.bf16.msra.mxu0 %v362
    %380 = vmatpush.bf16.msra.mxu0 %v361
    %381 = vmatpush.bf16.msra.mxu0 %v360
    %382 = vmatpush.bf16.msra.mxu0 %v359
    %383 = vmatmul.bf16.gmra.mxu0 %v310
    %v384 = vpop.f32.mrf.mxu0
    %v385 = vadd.f32 0.0, %v384
    %v386 = vpop.f32.mrf.mxu0
    %v387 = vadd.f32 0.0, %v386
    %388 = vdwg.mxu0
    %v389 = vmax.f32 %v385, 1e-20
    %v390 = vmax.f32 %v387, 1e-20
    %v391 = vrcp.pop %v389
    %v392 = vrcp.pop %v390
    %v393 = vmul.f32 %v307, %v391
    %v394 = vmul.f32 %v309, %v392
    %395 = vst [vmem:[#allocation4] sm:$0xff] %v393
    %396 = vst [vmem:[#allocation4 + $0x8] sm:$0xff] %v394
    %v397 = vpack.c.bf16 %v394, %v393
    %398 = vrot.lane.b32.xlu0 %v242, 96
    %v399 = vpop.permute.xlu0 %398
    %400 = vrot.lane.b32.xlu0 %v243, 96
    %v401 = vpop.permute.xlu0 %400
    %402 = vrot.lane.b32.xlu0 %v244, 96
    %v403 = vpop.permute.xlu0 %402
    %404 = vrot.lane.b32.xlu0 %v245, 96
    %v405 = vpop.permute.xlu0 %404
    %406 = vrot.lane.b32.xlu0 %v246, 96
    %v407 = vpop.permute.xlu0 %406
    %408 = vrot.lane.b32.xlu0 %v247, 96
    %v409 = vpop.permute.xlu0 %408
    %410 = vrot.lane.b32.xlu0 %v248, 96
    %v411 = vpop.permute.xlu0 %410
    %412 = vrot.lane.b32.xlu0 %v249, 96
    %v413 = vpop.permute.xlu0 %412
    %422 = vmatpush.bf16.msra.mxu0 %v413
    %423 = vmatpush.bf16.msra.mxu0 %v411
    %424 = vmatpush.bf16.msra.mxu0 %v409
    %425 = vmatpush.bf16.msra.mxu0 %v407
    %426 = vmatpush.bf16.msra.mxu0 %v405
    %427 = vmatpush.bf16.msra.mxu0 %v403
    %428 = vmatpush.bf16.msra.mxu0 %v401
    %429 = vmatpush.bf16.msra.mxu0 %v399
    %430 = vmatmul.bf16.gmra.mxu0 %v397
    %v431 = vpop.f32.mrf.mxu0
    %v432 = vadd.f32 0.0, %v431
    %v433 = vpop.f32.mrf.mxu0
    %v434 = vadd.f32 0.0, %v433
    %435 = vdwg.mxu0
    %v436 = vpack.c.bf16 %v434, %v432
    %v437 = vld [vmem:[%s9] sm:$0xf]
    %v438 = vld [vmem:[%s9 + $0x4] sm:$0xf]
    %v439 = vld [vmem:[%s9 + $0x8] sm:$0xf]
    %v440 = vld [vmem:[%s9 + $0xc] sm:$0xf]
    %v441 = vld [vmem:[%s10] sm:$0x1]
    %v443 = vperm.slane %v441, 0
    %v449 = vunpack.c.l.b16 %v437
    %v450 = vunpack.c.l.b16 %v438
    %v451 = vunpack.c.l.b16 %v439
    %v452 = vunpack.c.l.b16 %v440
    %v453 = vpack.c.b16 %v450, %v449
    %v454 = vpack.c.b16 %v452, %v451
    %v458 = vsel %vm94, %v436, 0
    %460 = vmatpush.bf16.msra.mxu0 0
    %461 = vmatpush.bf16.msra.mxu0 0
    %462 = vmatpush.bf16.msra.mxu0 0
    %463 = vmatpush.bf16.msra.mxu0 0
    %464 = vmatpush.bf16.msra.mxu0 0
    %465 = vmatpush.bf16.msra.mxu0 0
    %466 = vmatpush.bf16.msra.mxu0 %v454
    %467 = vmatpush.bf16.msra.mxu0 %v453
    %468 = vmatmul.bf16.gmra.mxu0 %v458
    %v469 = vpop.f32.mrf.mxu0
    %v470 = vadd.f32 %v443, %v469
    %v471 = vpop.f32.mrf.mxu0
    %v472 = vadd.f32 %v443, %v471
    %473 = vdwg.mxu0
    %v474 = vadd.f32 %v67, %v470
    %v475 = vadd.f32 %v68, %v472
    %v476 = vld [vmem:[%s11] sm:$0x1]
    %v477 = vld [vmem:[%s12] sm:$0x1]
    %v478 = vsel %vm94, %v474, 0.0
    %479 = vadd.xlane.f32.xlu0 %v478
    %v480 = vpop.xlane.xlu0 %479
    %v481 = vsel %vm94, %v475, 0.0
    %482 = vadd.xlane.f32.xlu0 %v481
    %v483 = vpop.xlane.xlu0 %482
    %v484 = vrcp.pop 32.0
    %v485 = vmul.f32 32.0, %v484
    %v486 = vsub.f32 1.0, %v485
    %v487 = vmul.f32 %v484, %v486
    %v488 = vadd.f32 %v484, %v487
    %vm489 = vweird.f32 %v484
    %v490 = vsel %vm489, %v484, %v488
    %v491 = vmul.f32 %v480, %v490
    %v492 = vmul.f32 %v483, %v490
    %v493 = vsub.f32 %v474, %v491
    %v494 = vsub.f32 %v475, %v492
    %v495 = vmul.f32 %v493, %v493
    %v496 = vmul.f32 %v494, %v494
    %v497 = vsel %vm94, %v495, 0.0
    %498 = vadd.xlane.f32.xlu0 %v497
    %v499 = vpop.xlane.xlu0 %498
    %v500 = vsel %vm94, %v496, 0.0
    %501 = vadd.xlane.f32.xlu0 %v500
    %v502 = vpop.xlane.xlu0 %501
    %v503 = vmul.f32 %v499, %v490
    %v504 = vmul.f32 %v502, %v490
    %v505 = vadd.f32 %v503, 1e-05
    %v506 = vadd.f32 %v504, 1e-05
    %v507 = vrsqrt.pop %v505
    %v508 = vmul.f32 %v507, %v505
    %v509 = vmul.f32 %v508, %v507
    %v510 = vmul.f32 0.5, %v509
    %v511 = vsub.f32 1.5, %v510
    %v512 = vmul.f32 %v507, %v511
    %vm513 = vweird.f32 %v505
    %vm514 = vweird.f32 %v507
    %vm515 = vmor %vm513, %vm514
    %v516 = vsel %vm515, %v507, %v512
    %v517 = vrsqrt.pop %v506
    %v518 = vmul.f32 %v517, %v506
    %v519 = vmul.f32 %v518, %v517
    %v520 = vmul.f32 0.5, %v519
    %v521 = vsub.f32 1.5, %v520
    %v522 = vmul.f32 %v517, %v521
    %vm523 = vweird.f32 %v506
    %vm524 = vweird.f32 %v517
    %vm525 = vmor %vm523, %vm524
    %v526 = vsel %vm525, %v517, %v522
    %v527 = vmul.f32 %v493, %v516
    %v528 = vmul.f32 %v494, %v526
    %v530 = vperm.slane %v476, 0
    %v532 = vmul.f32 %v527, %v530
    %v533 = vmul.f32 %v528, %v530
    %v535 = vperm.slane %v477, 0
    %v537 = vadd.f32 %v532, %v535
    %v538 = vadd.f32 %v533, %v535
    %v539 = vpack.c.bf16 %v538, %v537
    %v540 = vld [vmem:[%s13] sm:$0xf]
    %v541 = vld [vmem:[%s13 + $0x4] sm:$0xf]
    %v542 = vld [vmem:[%s13 + $0x8] sm:$0xf]
    %v543 = vld [vmem:[%s13 + $0xc] sm:$0xf]
    %v544 = vld [vmem:[%s14] sm:$0x1]
    %v546 = vperm.slane %v544, 0
    %v552 = vunpack.c.l.b16 %v540
    %v553 = vunpack.c.l.b16 %v541
    %v554 = vunpack.c.l.b16 %v542
    %v555 = vunpack.c.l.b16 %v543
    %v556 = vpack.c.b16 %v553, %v552
    %v557 = vpack.c.b16 %v555, %v554
    %v561 = vsel %vm94, %v539, 0
    %563 = vmatpush.bf16.msra.mxu0 0
    %564 = vmatpush.bf16.msra.mxu0 0
    %565 = vmatpush.bf16.msra.mxu0 0
    %566 = vmatpush.bf16.msra.mxu0 0
    %567 = vmatpush.bf16.msra.mxu0 0
    %568 = vmatpush.bf16.msra.mxu0 0
    %569 = vmatpush.bf16.msra.mxu0 %v557
    %570 = vmatpush.bf16.msra.mxu0 %v556
    %571 = vmatmul.bf16.gmra.mxu0 %v561
    %v572 = vpop.f32.mrf.mxu0
    %v573 = vadd.f32 %v546, %v572
    %v574 = vpop.f32.mrf.mxu0
    %v575 = vadd.f32 %v546, %v574
    %576 = vdwg.mxu0
    %v577 = vmul.f32 %v573, 0.5
    %v578 = vmul.f32 %v575, 0.5
    %v579 = vmul.f32 %v573, 0.044715
    %v580 = vmul.f32 %v575, 0.044715
    %v581 = vmul.f32 %v579, %v573
    %v582 = vmul.f32 %v580, %v575
    %v583 = vmul.f32 %v581, %v573
    %v584 = vmul.f32 %v582, %v575
    %v585 = vadd.f32 %v573, %v583
    %v586 = vadd.f32 %v575, %v584
    %v587 = vmul.f32 %v585, 0.7978846
    %v588 = vmul.f32 %v586, 0.7978846
    %v589 = vtanh.pop %v587
    %v590 = vtanh.pop %v588
    %v591 = vadd.f32 %v589, 1.0
    %v592 = vadd.f32 %v590, 1.0
    %v593 = vmul.f32 %v577, %v591
    %v594 = vmul.f32 %v578, %v592
    %v595 = vpack.c.bf16 %v594, %v593
    %v596 = vld [vmem:[%s15] sm:$0xf]
    %v597 = vld [vmem:[%s15 + $0x4] sm:$0xf]
    %v598 = vld [vmem:[%s15 + $0x8] sm:$0xf]
    %v599 = vld [vmem:[%s15 + $0xc] sm:$0xf]
    %v600 = vld [vmem:[%s15 + $0x10] sm:$0xf]
    %v601 = vld [vmem:[%s15 + $0x14] sm:$0xf]
    %v602 = vld [vmem:[%s15 + $0x18] sm:$0xf]
    %v603 = vld [vmem:[%s15 + $0x1c] sm:$0xf]
    %v604 = vld [vmem:[%s16] sm:$0x1]
    %v606 = vperm.slane %v604, 0
    %v616 = vunpack.c.l.b16 %v596
    %v617 = vunpack.c.l.b16 %v597
    %v618 = vunpack.c.l.b16 %v598
    %v619 = vunpack.c.l.b16 %v599
    %v620 = vunpack.c.l.b16 %v600
    %v621 = vunpack.c.l.b16 %v601
    %v622 = vunpack.c.l.b16 %v602
    %v623 = vunpack.c.l.b16 %v603
    %v624 = vpack.c.b16 %v617, %v616
    %v625 = vpack.c.b16 %v619, %v618
    %v626 = vpack.c.b16 %v621, %v620
    %v627 = vpack.c.b16 %v623, %v622
    %vm632 = vcmask 523264
    %v634 = vsel %vm632, %v595, 0
    %636 = vmatpush.bf16.msra.mxu0 0
    %637 = vmatpush.bf16.msra.mxu0 0
    %638 = vmatpush.bf16.msra.mxu0 0
    %639 = vmatpush.bf16.msra.mxu0 0
    %640 = vmatpush.bf16.msra.mxu0 %v627
    %641 = vmatpush.bf16.msra.mxu0 %v626
    %642 = vmatpush.bf16.msra.mxu0 %v625
    %643 = vmatpush.bf16.msra.mxu0 %v624
    %644 = vmatmul.bf16.gmra.mxu0 %v634
    %v645 = vpop.f32.mrf.mxu0
    %v646 = vadd.f32 %v606, %v645
    %v647 = vpop.f32.mrf.mxu0
    %v648 = vadd.f32 %v606, %v647
    %649 = vdwg.mxu0
    %v650 = vadd.f32 %v537, %v646
    %v651 = vadd.f32 %v538, %v648
    %v652 = vld [vmem:[%s17] sm:$0x1]
    %v653 = vld [vmem:[%s18] sm:$0x1]
    %v654 = vsel %vm94, %v650, 0.0
    %655 = vadd.xlane.f32.xlu0 %v654
    %v656 = vpop.xlane.xlu0 %655
    %v657 = vsel %vm94, %v651, 0.0
    %658 = vadd.xlane.f32.xlu0 %v657
    %v659 = vpop.xlane.xlu0 %658
    %v660 = vmul.f32 %v656, %v490
    %v661 = vmul.f32 %v659, %v490
    %v662 = vsub.f32 %v650, %v660
    %v663 = vsub.f32 %v651, %v661
    %v664 = vmul.f32 %v662, %v662
    %v665 = vmul.f32 %v663, %v663
    %v666 = vsel %vm94, %v664, 0.0
    %667 = vadd.xlane.f32.xlu0 %v666
    %v668 = vpop.xlane.xlu0 %667
    %v669 = vsel %vm94, %v665, 0.0
    %670 = vadd.xlane.f32.xlu0 %v669
    %v671 = vpop.xlane.xlu0 %670
    %v672 = vmul.f32 %v668, %v490
    %v673 = vmul.f32 %v671, %v490
    %v674 = vadd.f32 %v672, 1e-05
    %v675 = vadd.f32 %v673, 1e-05
    %v676 = vrsqrt.pop %v674
    %v677 = vmul.f32 %v676, %v674
    %v678 = vmul.f32 %v677, %v676
    %v679 = vmul.f32 0.5, %v678
    %v680 = vsub.f32 1.5, %v679
    %v681 = vmul.f32 %v676, %v680
    %vm682 = vweird.f32 %v674
    %vm683 = vweird.f32 %v676
    %vm684 = vmor %vm682, %vm683
    %v685 = vsel %vm684, %v676, %v681
    %v686 = vrsqrt.pop %v675
    %v687 = vmul.f32 %v686, %v675
    %v688 = vmul.f32 %v687, %v686
    %v689 = vmul.f32 0.5, %v688
    %v690 = vsub.f32 1.5, %v689
    %v691 = vmul.f32 %v686, %v690
    %vm692 = vweird.f32 %v675
    %vm693 = vweird.f32 %v686
    %vm694 = vmor %vm692, %vm693
    %v695 = vsel %vm694, %v686, %v691
    %v696 = vmul.f32 %v662, %v685
    %v697 = vmul.f32 %v663, %v695
    %v699 = vperm.slane %v652, 0
    %v701 = vmul.f32 %v696, %v699
    %v702 = vmul.f32 %v697, %v699
    %v704 = vperm.slane %v653, 0
    %v706 = vadd.f32 %v701, %v704
    %v707 = vadd.f32 %v702, %v704
    %710 = vrot.lane.b32.xlu0 %v470, 32
    %v711 = vpop.permute.xlu0 %710
    %712 = vrot.lane.b32.xlu0 %v472, 32
    %v713 = vpop.permute.xlu0 %712
    %v716 = vsel %vm94, %v706, %v711
    %v717 = vsel %vm94, %v707, %v713
    %721 = vrot.lane.b32.xlu0 %v716, 64
    %v722 = vpop.permute.xlu0 %721
    %723 = vrot.lane.b32.xlu0 %v717, 64
    %v724 = vpop.permute.xlu0 %723
    %725 = vrot.lane.b32.xlu0 0.0, 64
    %v726 = vpop.permute.xlu0 %725
    %v730 = vsel %vm632, %v152, %v722
    %v731 = vsel %vm632, %v154, %v724
    %v732 = vsel %vm632, %v157, %v726
    %v733 = vsel %vm632, %v159, %v726
    %734 = vst [vmem:[#allocation2] sm:$0xff] %v730
    %735 = vst [vmem:[#allocation2 + $0x8] sm:$0xff] %v731
    %736 = vst [vmem:[#allocation2 + $0x10] sm:$0xff] %v732
    %737 = vst [vmem:[#allocation2 + $0x18] sm:$0xff] %v733
    // Predicated region
    $region78: #{tpu_custom_call.1} parent=1 // pred_check
      _
    $region79: #{tpu_custom_call.1} parent=1 // pred_check_branch
      %739 = sbr.rel (0) target = $region81
    $region80: #{tpu_custom_call.1} parent=1 // pred_region
      %741 = vsyncadd [#allocation3], 0
      %s742 = sshll.u32 [#allocation2], 4
      %s743 = int_to_ptr.vmem [resolvable:$true] %s742
      %s744 = sshll.u32 %s19, 4
      %s745 = int_to_ptr.hbm [resolvable:$true] %s744
      %750 = dma.vmem_to_hbm [thread:$0]  %s743, 512, %s745, [#allocation3], 128, 128, 8
    $region81: #{tpu_custom_call.1} parent=1 // pred_fallthru
      _
    // Predicated region
    $region82: #{tpu_custom_call.1} parent=1 // pred_check
      _
    $region83: #{tpu_custom_call.1} parent=1 // pred_check_branch
      %752 = sbr.rel (0) target = $region85
    $region84: #{tpu_custom_call.1} parent=1 // pred_region
      %754 = vsyncadd [#allocation5], 0
      %s755 = sshll.u32 [#allocation4], 4
      %s756 = int_to_ptr.vmem [resolvable:$true] %s755
      %s757 = sshll.u32 %s20, 4
      %s758 = int_to_ptr.hbm [resolvable:$true] %s757
      %763 = dma.vmem_to_hbm [thread:$0]  %s756, 256, %s758, [#allocation5], 128, 128, 8
    $region85: #{tpu_custom_call.1} parent=1 // pred_fallthru
      _
    // Predicated region
    $region86: #{tpu_custom_call.1} parent=1 // pred_check
      _
    $region87: #{tpu_custom_call.1} parent=1 // pred_check_branch
      %765 = sbr.rel (0) target = $region89
    $region88: #{tpu_custom_call.1} parent=1 // pred_region
      %767 = dma.done [#allocation3], 512
    $region89: #{tpu_custom_call.1} parent=1 // pred_fallthru
      _
    // Predicated region
    $region90: #{tpu_custom_call.1} parent=1 // pred_check
      _
    $region91: #{tpu_custom_call.1} parent=1 // pred_check_branch
      %769 = sbr.rel (0) target = $region93
    $region92: #{tpu_custom_call.1} parent=1 // pred_region
      %771 = dma.done [#allocation5], 256
    $region93: #{tpu_custom_call.1} parent=1 // pred_fallthru
      _
    %772 = vsyncpa [#allocation3], 1
    %773 = vsyncpa [#allocation5], 1

</llo_original>
